<compile_context>
chip_gen: v7x
topology: tpu7x:2x2x1
jax: 0.10.0
libtpu: 0.0.40
codegen_flags: <defaults>
</compile_context>

<pallas_src>
import functools

import jax
import jax.numpy as jnp
import numpy as np
from jax.experimental import pallas as pl
from jax.experimental.pallas import tpu as pltpu


def _round_up(x, m):
    return ((x + m - 1) // m) * m


# ----------------------------- fused kernel ---------------------------------

def _fused_tcn_kernel(x_ref, *refs, block_meta):
    """All temporal blocks fused; activations never leave VMEM."""
    out_ref = refs[-1]
    w_refs = refs[:-1]
    # Elementwise math stays f32 (v5e has no bf16 VALU); MXU operands are cast
    # to the weight dtype right before each dot.
    act = x_ref[0].astype(jnp.float32)                      # (cin_p0, L)

    ri = 0
    for meta in block_meta:
        d, K = meta["dilation"], meta["k"]
        cout_p, has_ds = meta["cout_p"], meta["has_ds"]
        pad = d * (K - 1)
        l_in = act.shape[1]
        l_mid = l_in - pad
        l_out = l_in - 2 * pad
        w1, b1, w2, b2 = w_refs[ri:ri + 4]
        ri += 4
        cdt = w1.dtype

        # conv1 (+ folded 1x1 downsample rows): K accumulating MXU matmuls,
        # f32 accumulator, no stacked-tap concat / relayout.
        acc = jnp.dot(w1[0], act[:, 0:l_mid].astype(cdt),
                      preferred_element_type=jnp.float32)
        for k in range(1, K):
            acc = acc + jnp.dot(w1[k], act[:, k * d:k * d + l_mid].astype(cdt),
                                preferred_element_type=jnp.float32)
        acc = acc + b1[...]                                  # f32 bias add
        h = jnp.maximum(acc[:cout_p], 0.0)                   # (cout_p, l_mid)
        if has_ds:
            # residual pre-activation = Wd @ x[:, pad:pad+l_out] + bd,
            # produced by the same matmul (rows cout_p:), column-0 aligned.
            res = acc[cout_p:, :l_out]
        else:
            # identity residual: exact crop of the input (PyTorch semantics).
            res = act[:, pad:pad + l_out]

        # conv2: K accumulating MXU matmuls on the VMEM-resident h.
        acc2 = jnp.dot(w2[0], h[:, 0:l_out].astype(cdt),
                       preferred_element_type=jnp.float32)
        for k in range(1, K):
            acc2 = acc2 + jnp.dot(w2[k], h[:, k * d:k * d + l_out].astype(cdt),
                                  preferred_element_type=jnp.float32)
        out = jnp.maximum(acc2 + b2[...], 0.0)

        act = jnp.maximum(out + res, 0.0)
        # TODO(synk): dropout1/dropout2 treated as identity (eval semantics).

    out_ref[0] = act.astype(out_ref.dtype)


# ----------------------------- parameter packing ----------------------------

def _pack_block(raw, sub, dtype):
    """Pack one block's PyTorch-layout weights into kernel layout.

    w1 ext: (K, rows, cin_p)  rows = 2*cout_p if downsample else cout_p;
            the downsample Wd occupies rows [cout_p:cout_p+c_out] of the LAST
            tap (so acc[cout_p:, :l_out] == Wd @ x[:, pad:pad+l_out]).
    Biases stay f32 (elementwise math is f32 inside the kernel).
    """
    w1 = np.asarray(raw["w1"], np.float32)                   # (c_out, c_in, K)
    b1 = np.asarray(raw["b1"], np.float32)
    w2 = np.asarray(raw["w2"], np.float32)                   # (c_out, c_out, K)
    b2 = np.asarray(raw["b2"], np.float32)
    wd = None if raw["wd"] is None else np.asarray(raw["wd"], np.float32)
    bd = None if raw["bd"] is None else np.asarray(raw["bd"], np.float32)

    c_out, c_in, K = w1.shape
    cin_p = _round_up(c_in, sub)
    cout_p = _round_up(c_out, sub)
    has_ds = wd is not None
    rows = 2 * cout_p if has_ds else cout_p

    w1e = np.zeros((K, rows, cin_p), np.float32)
    b1e = np.zeros((rows, 1), np.float32)
    for k in range(K):
        w1e[k, :c_out, :c_in] = w1[:, :, k]
    b1e[:c_out, 0] = b1
    if has_ds:
        w1e[K - 1, cout_p:cout_p + c_out, :c_in] = wd
        b1e[cout_p:cout_p + c_out, 0] = bd

    w2e = np.zeros((K, cout_p, cout_p), np.float32)
    b2e = np.zeros((cout_p, 1), np.float32)
    for k in range(K):
        w2e[k, :c_out, :c_out] = w2[:, :, k]
    b2e[:c_out, 0] = b2

    return dict(
        w1=jnp.asarray(w1e, dtype), b1=jnp.asarray(b1e, jnp.float32),
        w2=jnp.asarray(w2e, dtype), b2=jnp.asarray(b2e, jnp.float32),
        dilation=raw["dilation"], k=K, c_out=c_out, c_in=c_in,
        cout_p=cout_p, cin_p=cin_p, has_ds=has_ds)


# ----------------------------- top-level wrapper ----------------------------

def temporal_conv_net(x, raw_params, *, dtype=jnp.float32,
                      vmem_limit_bytes=48 * 1024 * 1024):
    """Full TemporalConvNet forward as a single fused pallas_call."""
    B, c_in, L = x.shape
    sub = 8 if np.dtype(dtype).itemsize == 4 else 16         # f32 / bf16 sublanes
    packed = [_pack_block(p, sub, dtype) for p in raw_params]

    # Valid-conv output lengths per block.
    l = L
    for p in packed:
        l -= 2 * p["dilation"] * (p["k"] - 1)
        if l <= 0:
            raise ValueError(
                f"Sequence length {L} too short for the dilation stack.")
    l_final = l

    cin_p0 = packed[0]["cin_p"]
    cout_p_last = packed[-1]["cout_p"]
    c_out_last = packed[-1]["c_out"]

    # Sublane-align channels (zero pad) and cast activations once, host-side.
    xp = jnp.pad(x, ((0, 0), (0, cin_p0 - c_in), (0, 0))).astype(dtype)

    def _const_spec(shape):
        zeros = (0,) * len(shape)
        return pl.BlockSpec(shape, lambda b, _z=zeros: _z)   # weights resident

    in_specs = [pl.BlockSpec((1, cin_p0, L), lambda b: (b, 0, 0))]
    args = [xp]
    block_meta = []
    for p in packed:
        for name in ("w1", "b1", "w2", "b2"):
            a = p[name]
            in_specs.append(_const_spec(a.shape))
            args.append(a)
        block_meta.append(dict(dilation=p["dilation"], k=p["k"],
                               cout_p=p["cout_p"], has_ds=p["has_ds"]))

    kernel = functools.partial(_fused_tcn_kernel, block_meta=tuple(block_meta))

    y = pl.pallas_call(
        kernel,
        out_shape=jax.ShapeDtypeStruct((B, cout_p_last, l_final), dtype),
        grid=(B,),
        in_specs=in_specs,
        out_specs=pl.BlockSpec((1, cout_p_last, l_final), lambda b: (b, 0, 0)),
        compiler_params=pltpu.CompilerParams(
            dimension_semantics=("parallel",),
            vmem_limit_bytes=vmem_limit_bytes),
    )(*args)

    return y[:, :c_out_last, :]                               # drop padded channels


# ----------------------------- raw parameters (PyTorch layout) --------------

def build_raw_tcn_params(key, num_inputs, num_channels, kernel_size=2):
    """PyTorch-style init: weights ~ N(0, 0.01), biases ~ Conv1d default."""
    params = []
    for i, c_out in enumerate(num_channels):
        c_in = num_inputs if i == 0 else num_channels[i - 1]
        dilation = 2 ** i
        key, kw1, kb1, kw2, kb2, kwd, kbd = jax.random.split(key, 7)
        w1 = 0.01 * jax.random.normal(kw1, (c_out, c_in, kernel_size), jnp.float32)
        bnd1 = 1.0 / np.sqrt(c_in * kernel_size)
        b1 = jax.random.uniform(kb1, (c_out,), jnp.float32, -bnd1, bnd1)
        w2 = 0.01 * jax.random.normal(kw2, (c_out, c_out, kernel_size), jnp.float32)
        bnd2 = 1.0 / np.sqrt(c_out * kernel_size)
        b2 = jax.random.uniform(kb2, (c_out,), jnp.float32, -bnd2, bnd2)
        if c_in != c_out:
            wd = 0.01 * jax.random.normal(kwd, (c_out, c_in), jnp.float32)
            bndd = 1.0 / np.sqrt(c_in)
            bd = jax.random.uniform(kbd, (c_out,), jnp.float32, -bndd, bndd)
        else:
            wd, bd = None, None
        params.append(dict(w1=w1, b1=b1, w2=w2, b2=b2, wd=wd, bd=bd,
                           dilation=dilation, k=kernel_size))
    return params


# ----------------------------- reference (pure JAX) --------------------------

def _ref_conv1d(x, w, b, dilation):
    K = w.shape[2]
    l_out = x.shape[2] - dilation * (K - 1)
    out = jnp.zeros((x.shape[0], w.shape[0], l_out), jnp.float32) + b[None, :, None]
    for k in range(K):
        out = out + jnp.einsum("oc,bcl->bol", w[:, :, k],
                               x[:, :, k * dilation:k * dilation + l_out])
    return out


def _ref_tcn(x, raw_params):
    for p in raw_params:
        d, K = p["dilation"], p["k"]
        pad = d * (K - 1)
        h = jnp.maximum(_ref_conv1d(x, p["w1"], p["b1"], d), 0.0)
        out = jnp.maximum(_ref_conv1d(h, p["w2"], p["b2"], d), 0.0)
        xc = x[:, :, pad:x.shape[2] - pad]
        if p["wd"] is None:
            res = xc
        else:
            res = jnp.einsum("oc,bcl->bol", p["wd"], xc) + p["bd"][None, :, None]
        x = jnp.maximum(out + res, 0.0)
    return x


# ----------------------------- main ------------------------------------------

if __name__ == "__main__":
    key = jax.random.PRNGKey(0)
    k_x, k_p = jax.random.split(key)

    B, C_in, L = 2, 4, 16
    num_channels = [8, 8]          # two temporal blocks, dilations 1 and 2
    kernel_size = 2

    x = jax.random.normal(k_x, (B, C_in, L), jnp.float32)
    raw_params = build_raw_tcn_params(k_p, C_in, num_channels, kernel_size)

    y_ref = _ref_tcn(x, raw_params)

    # f32 path (exact check).
    y32 = temporal_conv_net(x, raw_params, dtype=jnp.float32)
    y32 = jax.block_until_ready(y32)
    np.testing.assert_allclose(np.asarray(y32), np.asarray(y_ref),
                               rtol=1e-5, atol=1e-5)

    # bf16 I/O + bf16 MXU operands (f32 accumulation); looser tolerance.
    y16 = temporal_conv_net(x, raw_params, dtype=jnp.bfloat16)
    y16 = jax.block_until_ready(y16)
    np.testing.assert_allclose(np.asarray(y16.astype(jnp.float32)),
                               np.asarray(y_ref), rtol=5e-2, atol=5e-2)

    print("KERNEL_OK")
</pallas_src>

<mosaic_0001>
module attributes {stable_mosaic.version = 11 : i64} {
  func.func @_fused_tcn_kernel(%arg0: i32, %arg1: memref<1x8x16xf32, #tpu.memory_space<vmem>>, %arg2: memref<2x16x8xf32, #tpu.memory_space<vmem>>, %arg3: memref<16x1xf32, #tpu.memory_space<vmem>>, %arg4: memref<2x8x8xf32, #tpu.memory_space<vmem>>, %arg5: memref<8x1xf32, #tpu.memory_space<vmem>>, %arg6: memref<2x8x8xf32, #tpu.memory_space<vmem>>, %arg7: memref<8x1xf32, #tpu.memory_space<vmem>>, %arg8: memref<2x8x8xf32, #tpu.memory_space<vmem>>, %arg9: memref<8x1xf32, #tpu.memory_space<vmem>>, %arg10: memref<1x8x10xf32, #tpu.memory_space<vmem>>) attributes {dimension_semantics = [#tpu.dimension_semantics<parallel>], iteration_bounds = array<i64: 2>, scalar_prefetch = 0 : i64, scratch_operands = 0 : i64, tpu.core_type = #tpu.core_type<tc>, window_params = [{transform_indices = @transform_0, window_bounds = array<i64: 1, 8, 16>}, {pipeline_mode = #tpu.pipeline_mode<synchronous>, transform_indices = @transform_1, window_bounds = array<i64: 2, 16, 8>}, {pipeline_mode = #tpu.pipeline_mode<synchronous>, transform_indices = @transform_2, window_bounds = array<i64: 16, 1>}, {pipeline_mode = #tpu.pipeline_mode<synchronous>, transform_indices = @transform_3, window_bounds = array<i64: 2, 8, 8>}, {pipeline_mode = #tpu.pipeline_mode<synchronous>, transform_indices = @transform_4, window_bounds = array<i64: 8, 1>}, {pipeline_mode = #tpu.pipeline_mode<synchronous>, transform_indices = @transform_5, window_bounds = array<i64: 2, 8, 8>}, {pipeline_mode = #tpu.pipeline_mode<synchronous>, transform_indices = @transform_6, window_bounds = array<i64: 8, 1>}, {pipeline_mode = #tpu.pipeline_mode<synchronous>, transform_indices = @transform_7, window_bounds = array<i64: 2, 8, 8>}, {pipeline_mode = #tpu.pipeline_mode<synchronous>, transform_indices = @transform_8, window_bounds = array<i64: 8, 1>}, {transform_indices = @transform_9, window_bounds = array<i64: 1, 8, 10>}]} {
    %c0 = arith.constant 0 : index
    %c0_0 = arith.constant 0 : index
    %c0_1 = arith.constant 0 : index
    %0 = vector.load %arg1[%c0, %c0_0, %c0_1] : memref<1x8x16xf32, #tpu.memory_space<vmem>>, vector<1x8x16xf32>
    %1 = vector.shape_cast %0 : vector<1x8x16xf32> to vector<8x16xf32>
    %c0_2 = arith.constant 0 : index
    %c0_3 = arith.constant 0 : index
    %c0_4 = arith.constant 0 : index
    %2 = vector.load %arg2[%c0_2, %c0_3, %c0_4] : memref<2x16x8xf32, #tpu.memory_space<vmem>>, vector<1x16x8xf32>
    %3 = vector.shape_cast %2 : vector<1x16x8xf32> to vector<16x8xf32>
    %4 = vector.extract_strided_slice %1 {offsets = [0, 0], sizes = [8, 15], strides = [1, 1]} : vector<8x16xf32> to vector<8x15xf32>
    %cst = arith.constant dense<0.000000e+00> : vector<16x15xf32>
    %5 = tpu.matmul %3, %4, %cst {dimension_numbers = #tpu.dot_dimension_numbers<[1], [0], [0], [1], [0, 0, 1, 1], [], []>} : vector<16x8xf32>, vector<8x15xf32>, vector<16x15xf32> -> vector<16x15xf32>
    %c1 = arith.constant 1 : index
    %c0_5 = arith.constant 0 : index
    %c0_6 = arith.constant 0 : index
    %6 = vector.load %arg2[%c1, %c0_5, %c0_6] : memref<2x16x8xf32, #tpu.memory_space<vmem>>, vector<1x16x8xf32>
    %7 = vector.shape_cast %6 : vector<1x16x8xf32> to vector<16x8xf32>
    %8 = vector.extract_strided_slice %1 {offsets = [0, 1], sizes = [8, 15], strides = [1, 1]} : vector<8x16xf32> to vector<8x15xf32>
    %cst_7 = arith.constant dense<0.000000e+00> : vector<16x15xf32>
    %9 = tpu.matmul %7, %8, %cst_7 {dimension_numbers = #tpu.dot_dimension_numbers<[1], [0], [0], [1], [0, 0, 1, 1], [], []>} : vector<16x8xf32>, vector<8x15xf32>, vector<16x15xf32> -> vector<16x15xf32>
    %10 = arith.addf %5, %9 : vector<16x15xf32>
    %c0_8 = arith.constant 0 : index
    %c0_9 = arith.constant 0 : index
    %11 = vector.load %arg3[%c0_8, %c0_9] : memref<16x1xf32, #tpu.memory_space<vmem>>, vector<16x1xf32>
    %12 = vector.broadcast %11 : vector<16x1xf32> to vector<16x15xf32>
    %13 = arith.addf %10, %12 : vector<16x15xf32>
    %14 = vector.extract_strided_slice %13 {offsets = [0, 0], sizes = [8, 15], strides = [1, 1]} : vector<16x15xf32> to vector<8x15xf32>
    %cst_10 = arith.constant 0.000000e+00 : f32
    %15 = vector.broadcast %cst_10 : f32 to vector<8x15xf32>
    %16 = arith.maximumf %14, %15 : vector<8x15xf32>
    %17 = vector.extract_strided_slice %13 {offsets = [8, 0], sizes = [8, 14], strides = [1, 1]} : vector<16x15xf32> to vector<8x14xf32>
    %c0_11 = arith.constant 0 : index
    %c0_12 = arith.constant 0 : index
    %c0_13 = arith.constant 0 : index
    %18 = vector.load %arg4[%c0_11, %c0_12, %c0_13] : memref<2x8x8xf32, #tpu.memory_space<vmem>>, vector<1x8x8xf32>
    %19 = vector.shape_cast %18 : vector<1x8x8xf32> to vector<8x8xf32>
    %20 = vector.extract_strided_slice %16 {offsets = [0, 0], sizes = [8, 14], strides = [1, 1]} : vector<8x15xf32> to vector<8x14xf32>
    %cst_14 = arith.constant dense<0.000000e+00> : vector<8x14xf32>
    %21 = tpu.matmul %19, %20, %cst_14 {dimension_numbers = #tpu.dot_dimension_numbers<[1], [0], [0], [1], [0, 0, 1, 1], [], []>} : vector<8x8xf32>, vector<8x14xf32>, vector<8x14xf32> -> vector<8x14xf32>
    %c1_15 = arith.constant 1 : index
    %c0_16 = arith.constant 0 : index
    %c0_17 = arith.constant 0 : index
    %22 = vector.load %arg4[%c1_15, %c0_16, %c0_17] : memref<2x8x8xf32, #tpu.memory_space<vmem>>, vector<1x8x8xf32>
    %23 = vector.shape_cast %22 : vector<1x8x8xf32> to vector<8x8xf32>
    %24 = vector.extract_strided_slice %16 {offsets = [0, 1], sizes = [8, 14], strides = [1, 1]} : vector<8x15xf32> to vector<8x14xf32>
    %cst_18 = arith.constant dense<0.000000e+00> : vector<8x14xf32>
    %25 = tpu.matmul %23, %24, %cst_18 {dimension_numbers = #tpu.dot_dimension_numbers<[1], [0], [0], [1], [0, 0, 1, 1], [], []>} : vector<8x8xf32>, vector<8x14xf32>, vector<8x14xf32> -> vector<8x14xf32>
    %26 = arith.addf %21, %25 : vector<8x14xf32>
    %c0_19 = arith.constant 0 : index
    %c0_20 = arith.constant 0 : index
    %27 = vector.load %arg5[%c0_19, %c0_20] : memref<8x1xf32, #tpu.memory_space<vmem>>, vector<8x1xf32>
    %28 = vector.broadcast %27 : vector<8x1xf32> to vector<8x14xf32>
    %29 = arith.addf %26, %28 : vector<8x14xf32>
    %cst_21 = arith.constant 0.000000e+00 : f32
    %30 = vector.broadcast %cst_21 : f32 to vector<8x14xf32>
    %31 = arith.maximumf %29, %30 : vector<8x14xf32>
    %32 = arith.addf %31, %17 : vector<8x14xf32>
    %cst_22 = arith.constant 0.000000e+00 : f32
    %33 = vector.broadcast %cst_22 : f32 to vector<8x14xf32>
    %34 = arith.maximumf %32, %33 : vector<8x14xf32>
    %c0_23 = arith.constant 0 : index
    %c0_24 = arith.constant 0 : index
    %c0_25 = arith.constant 0 : index
    %35 = vector.load %arg6[%c0_23, %c0_24, %c0_25] : memref<2x8x8xf32, #tpu.memory_space<vmem>>, vector<1x8x8xf32>
    %36 = vector.shape_cast %35 : vector<1x8x8xf32> to vector<8x8xf32>
    %37 = vector.extract_strided_slice %34 {offsets = [0, 0], sizes = [8, 12], strides = [1, 1]} : vector<8x14xf32> to vector<8x12xf32>
    %cst_26 = arith.constant dense<0.000000e+00> : vector<8x12xf32>
    %38 = tpu.matmul %36, %37, %cst_26 {dimension_numbers = #tpu.dot_dimension_numbers<[1], [0], [0], [1], [0, 0, 1, 1], [], []>} : vector<8x8xf32>, vector<8x12xf32>, vector<8x12xf32> -> vector<8x12xf32>
    %c1_27 = arith.constant 1 : index
    %c0_28 = arith.constant 0 : index
    %c0_29 = arith.constant 0 : index
    %39 = vector.load %arg6[%c1_27, %c0_28, %c0_29] : memref<2x8x8xf32, #tpu.memory_space<vmem>>, vector<1x8x8xf32>
    %40 = vector.shape_cast %39 : vector<1x8x8xf32> to vector<8x8xf32>
    %41 = vector.extract_strided_slice %34 {offsets = [0, 2], sizes = [8, 12], strides = [1, 1]} : vector<8x14xf32> to vector<8x12xf32>
    %cst_30 = arith.constant dense<0.000000e+00> : vector<8x12xf32>
    %42 = tpu.matmul %40, %41, %cst_30 {dimension_numbers = #tpu.dot_dimension_numbers<[1], [0], [0], [1], [0, 0, 1, 1], [], []>} : vector<8x8xf32>, vector<8x12xf32>, vector<8x12xf32> -> vector<8x12xf32>
    %43 = arith.addf %38, %42 : vector<8x12xf32>
    %c0_31 = arith.constant 0 : index
    %c0_32 = arith.constant 0 : index
    %44 = vector.load %arg7[%c0_31, %c0_32] : memref<8x1xf32, #tpu.memory_space<vmem>>, vector<8x1xf32>
    %45 = vector.broadcast %44 : vector<8x1xf32> to vector<8x12xf32>
    %46 = arith.addf %43, %45 : vector<8x12xf32>
    %cst_33 = arith.constant 0.000000e+00 : f32
    %47 = vector.broadcast %cst_33 : f32 to vector<8x12xf32>
    %48 = arith.maximumf %46, %47 : vector<8x12xf32>
    %49 = vector.extract_strided_slice %34 {offsets = [0, 2], sizes = [8, 10], strides = [1, 1]} : vector<8x14xf32> to vector<8x10xf32>
    %c0_34 = arith.constant 0 : index
    %c0_35 = arith.constant 0 : index
    %c0_36 = arith.constant 0 : index
    %50 = vector.load %arg8[%c0_34, %c0_35, %c0_36] : memref<2x8x8xf32, #tpu.memory_space<vmem>>, vector<1x8x8xf32>
    %51 = vector.shape_cast %50 : vector<1x8x8xf32> to vector<8x8xf32>
    %52 = vector.extract_strided_slice %48 {offsets = [0, 0], sizes = [8, 10], strides = [1, 1]} : vector<8x12xf32> to vector<8x10xf32>
    %cst_37 = arith.constant dense<0.000000e+00> : vector<8x10xf32>
    %53 = tpu.matmul %51, %52, %cst_37 {dimension_numbers = #tpu.dot_dimension_numbers<[1], [0], [0], [1], [0, 0, 1, 1], [], []>} : vector<8x8xf32>, vector<8x10xf32>, vector<8x10xf32> -> vector<8x10xf32>
    %c1_38 = arith.constant 1 : index
    %c0_39 = arith.constant 0 : index
    %c0_40 = arith.constant 0 : index
    %54 = vector.load %arg8[%c1_38, %c0_39, %c0_40] : memref<2x8x8xf32, #tpu.memory_space<vmem>>, vector<1x8x8xf32>
    %55 = vector.shape_cast %54 : vector<1x8x8xf32> to vector<8x8xf32>
    %56 = vector.extract_strided_slice %48 {offsets = [0, 2], sizes = [8, 10], strides = [1, 1]} : vector<8x12xf32> to vector<8x10xf32>
    %cst_41 = arith.constant dense<0.000000e+00> : vector<8x10xf32>
    %57 = tpu.matmul %55, %56, %cst_41 {dimension_numbers = #tpu.dot_dimension_numbers<[1], [0], [0], [1], [0, 0, 1, 1], [], []>} : vector<8x8xf32>, vector<8x10xf32>, vector<8x10xf32> -> vector<8x10xf32>
    %58 = arith.addf %53, %57 : vector<8x10xf32>
    %c0_42 = arith.constant 0 : index
    %c0_43 = arith.constant 0 : index
    %59 = vector.load %arg9[%c0_42, %c0_43] : memref<8x1xf32, #tpu.memory_space<vmem>>, vector<8x1xf32>
    %60 = vector.broadcast %59 : vector<8x1xf32> to vector<8x10xf32>
    %61 = arith.addf %58, %60 : vector<8x10xf32>
    %cst_44 = arith.constant 0.000000e+00 : f32
    %62 = vector.broadcast %cst_44 : f32 to vector<8x10xf32>
    %63 = arith.maximumf %61, %62 : vector<8x10xf32>
    %64 = arith.addf %63, %49 : vector<8x10xf32>
    %cst_45 = arith.constant 0.000000e+00 : f32
    %65 = vector.broadcast %cst_45 : f32 to vector<8x10xf32>
    %66 = arith.maximumf %64, %65 : vector<8x10xf32>
    %c0_46 = arith.constant 0 : index
    %c0_47 = arith.constant 0 : index
    %c0_48 = arith.constant 0 : index
    %67 = vector.load %arg10[%c0_46, %c0_47, %c0_48] : memref<1x8x10xf32, #tpu.memory_space<vmem>>, vector<1x8x10xf32>
    %68 = vector.shape_cast %67 : vector<1x8x10xf32> to vector<8x10xf32>
    %69 = vector.shape_cast %66 : vector<8x10xf32> to vector<1x8x10xf32>
    tpu.vector_store %arg10[%c0_46, %c0_47, %c0_48], %69 {strides = array<i32>} : memref<1x8x10xf32, #tpu.memory_space<vmem>>, vector<1x8x10xf32>,
    return
  }
  func.func @transform_0(%arg0: i32) -> (i32, i32, i32) {
    %c0_i32 = arith.constant 0 : i32
    %c0_i32_0 = arith.constant 0 : i32
    %c0_i32_1 = arith.constant 0 : i32
    return %arg0, %c0_i32, %c0_i32_0 : i32, i32, i32
  }
  func.func @transform_1(%arg0: i32) -> (i32, i32, i32) {
    %c0_i32 = arith.constant 0 : i32
    %c0_i32_0 = arith.constant 0 : i32
    %c0_i32_1 = arith.constant 0 : i32
    %c0_i32_2 = arith.constant 0 : i32
    return %c0_i32, %c0_i32_0, %c0_i32_1 : i32, i32, i32
  }
  func.func @transform_2(%arg0: i32) -> (i32, i32) {
    %c0_i32 = arith.constant 0 : i32
    %c0_i32_0 = arith.constant 0 : i32
    %c0_i32_1 = arith.constant 0 : i32
    return %c0_i32, %c0_i32_0 : i32, i32
  }
  func.func @transform_3(%arg0: i32) -> (i32, i32, i32) {
    %c0_i32 = arith.constant 0 : i32
    %c0_i32_0 = arith.constant 0 : i32
    %c0_i32_1 = arith.constant 0 : i32
    %c0_i32_2 = arith.constant 0 : i32
    return %c0_i32, %c0_i32_0, %c0_i32_1 : i32, i32, i32
  }
  func.func @transform_4(%arg0: i32) -> (i32, i32) {
    %c0_i32 = arith.constant 0 : i32
    %c0_i32_0 = arith.constant 0 : i32
    %c0_i32_1 = arith.constant 0 : i32
    return %c0_i32, %c0_i32_0 : i32, i32
  }
  func.func @transform_5(%arg0: i32) -> (i32, i32, i32) {
    %c0_i32 = arith.constant 0 : i32
    %c0_i32_0 = arith.constant 0 : i32
    %c0_i32_1 = arith.constant 0 : i32
    %c0_i32_2 = arith.constant 0 : i32
    return %c0_i32, %c0_i32_0, %c0_i32_1 : i32, i32, i32
  }
  func.func @transform_6(%arg0: i32) -> (i32, i32) {
    %c0_i32 = arith.constant 0 : i32
    %c0_i32_0 = arith.constant 0 : i32
    %c0_i32_1 = arith.constant 0 : i32
    return %c0_i32, %c0_i32_0 : i32, i32
  }
  func.func @transform_7(%arg0: i32) -> (i32, i32, i32) {
    %c0_i32 = arith.constant 0 : i32
    %c0_i32_0 = arith.constant 0 : i32
    %c0_i32_1 = arith.constant 0 : i32
    %c0_i32_2 = arith.constant 0 : i32
    return %c0_i32, %c0_i32_0, %c0_i32_1 : i32, i32, i32
  }
  func.func @transform_8(%arg0: i32) -> (i32, i32) {
    %c0_i32 = arith.constant 0 : i32
    %c0_i32_0 = arith.constant 0 : i32
    %c0_i32_1 = arith.constant 0 : i32
    return %c0_i32, %c0_i32_0 : i32, i32
  }
  func.func @transform_9(%arg0: i32) -> (i32, i32, i32) {
    %c0_i32 = arith.constant 0 : i32
    %c0_i32_0 = arith.constant 0 : i32
    %c0_i32_1 = arith.constant 0 : i32
    return %arg0, %c0_i32, %c0_i32_0 : i32, i32, i32
  }
}

</mosaic_0001>

<llo_original>
// kernel: tpu_custom_call.1
$region0: #{tpu_custom_call.1}
  #allocation0 [shape = 'u32[]', space=smem, size = 0x4, offset = 0x4, fixed_abs, tag = 'smem constant byte address 0x4 - core index']
  #allocation1 [shape = 'u32[144,128]{1,0:T(1,128)}', space=vmem, size = 0x12000, scoped, tag = 'internal scratch']
  %s0 = inlined_call_operand.vmem [shape: f32[2,8,16], index: 0, kind: input, shape index: {}]
  %s1 = inlined_call_operand.vmem [shape: f32[2,16,8], index: 1, kind: input, shape index: {}]
  %s2 = inlined_call_operand.vmem [shape: f32[16,1], index: 2, kind: input, shape index: {}]
  %s3 = inlined_call_operand.vmem [shape: f32[2,8,8], index: 3, kind: input, shape index: {}]
  %s4 = inlined_call_operand.vmem [shape: f32[8,1], index: 4, kind: input, shape index: {}]
  %s5 = inlined_call_operand.vmem [shape: f32[2,8,8], index: 5, kind: input, shape index: {}]
  %s6 = inlined_call_operand.vmem [shape: f32[8,1], index: 6, kind: input, shape index: {}]
  %s7 = inlined_call_operand.vmem [shape: f32[2,8,8], index: 7, kind: input, shape index: {}]
  %s8 = inlined_call_operand.vmem [shape: f32[8,1], index: 8, kind: input, shape index: {}]
  %s9 = inlined_call_operand.hbm [shape: f32[2,8,10], index: 9, kind: output, shape index: {}]
  %s10 = sld [smem:[#allocation0]]
  $region69: #{tpu_custom_call.1} parent=0
    _
  %s12 = ssub.s32 1, %s10
  %s13 = scalar_select 0, %s12, %s10
  $region1: #{tpu_custom_call.1} parent=0
    #allocation2 [shape = 'u8[8192]{0}', space=vmem, size = 0x2000, scoped, tag = 'output window, operand 0']
    #allocation3 [shape = 's32[2]{0}', space=sflag, size = 0x8, scoped, tag = 'scoped memory for tpu_custom_call.1']
    %14 = vsyncpa [#allocation3], 0
    %s15 = scalar_lea.sflag [#allocation3], 1
    %16 = vsyncpa %s15, 0
    loop: start=0, step=1, limit=4
    $region2: #{tpu_custom_call.1} parent=1 // loop_pre_header
      _
    $region3: #{tpu_custom_call.1} parent=1 // loop_header
      %s18 = sphi 0, %s22
      %p19 = scmp.ge.s32.totalorder %s18, 4
      %s28 = sphi 0, %s30
      %s31 = sphi 0, %s28
      %s32 = sphi 0, %s31
      %s48 = sphi 0, %s32
      %s52 = sphi 0, %s52
      %s54 = sphi 0, %s52
      %s55 = sphi 0, %s54
      %s69 = sphi 0, %s55
      %s73 = sphi 0, %s73
      %s75 = sphi 0, %s73
      %s76 = sphi 0, %s75
      %s90 = sphi 0, %s76
      %s94 = sphi 0, %s94
      %s96 = sphi 0, %s94
      %s97 = sphi 0, %s96
      %s111 = sphi 0, %s97
      %s115 = sphi 0, %s115
      %s117 = sphi 0, %s115
      %s118 = sphi 0, %s117
      %s132 = sphi 0, %s118
      %s136 = sphi 0, %s136
      %s138 = sphi 0, %s136
      %s139 = sphi 0, %s138
      %s153 = sphi 0, %s139
      %s157 = sphi 0, %s157
      %s159 = sphi 0, %s157
      %s160 = sphi 0, %s159
      %s174 = sphi 0, %s160
      %s178 = sphi 0, %s178
      %s180 = sphi 0, %s178
      %s181 = sphi 0, %s180
      %s195 = sphi 0, %s181
      %s199 = sphi 0, %s199
      %s201 = sphi 0, %s199
      %s202 = sphi 0, %s201
      %s216 = sphi 0, %s202
      %s222 = sphi 0, %s224
      %s225 = sphi 0, %s222
      %s226 = sphi 0, %s225
      %s242 = sphi 0, %s226
    $region4: #{tpu_custom_call.1} parent=1 // loop_header_branch
      %21 = sbr.rel (%p19) target = $region8
    $region5: #{tpu_custom_call.1} parent=1 // loop_body
      %s23 = ssub.s32 %s18, 1
      %s24 = ssub.s32 %s18, 2
      %s25 = sadd.s32 %s18, 1
      %s26 = ssub.s32 %s18, %s25
      %p27 = scmp.eq.s32.totalorder %s26, 0
      %s29 = sadd.s32 %s28, 1
      %s30 = scalar_select %p27, %s28, %s29
      %p33 = pneg %p27
      %p34 = scmp.eq.s32.totalorder %s18, 1
      %p35 = por %p33, %p34
      %p36 = scmp.ne.s32.totalorder %s28, %s31
      %p37 = scmp.eq.s32.totalorder %s18, 0
      %p38 = por %p36, %p37
      %p39 = scmp.ne.s32.totalorder %s28, %s31
      %p40 = scmp.eq.s32.totalorder %s23, 1
      %p41 = por %p39, %p40
      %p42 = scmp.ne.s32.totalorder %s31, %s32
      %p43 = scmp.eq.s32.totalorder %s23, 0
      %p44 = por %p42, %p43
      %p45 = scmp.ne.s32.totalorder %s31, %s32
      %p46 = scmp.eq.s32.totalorder %s24, 1
      %p47 = por %p45, %p46
      %p49 = scmp.ne.s32.totalorder %s32, %s48
      %p50 = scmp.eq.s32.totalorder %s24, 0
      %p51 = por %p49, %p50
      %s53 = sadd.s32 %s52, 1
      %p56 = scmp.eq.s32.totalorder %s18, 1
      %p57 = scmp.ne.s32.totalorder %s52, %s54
      %p58 = scmp.eq.s32.totalorder %s18, 0
      %p59 = por %p57, %p58
      %p60 = scmp.ne.s32.totalorder %s52, %s54
      %p61 = scmp.eq.s32.totalorder %s23, 1
      %p62 = por %p60, %p61
      %p63 = scmp.ne.s32.totalorder %s54, %s55
      %p64 = scmp.eq.s32.totalorder %s23, 0
      %p65 = por %p63, %p64
      %p66 = scmp.ne.s32.totalorder %s54, %s55
      %p67 = scmp.eq.s32.totalorder %s24, 1
      %p68 = por %p66, %p67
      %p70 = scmp.ne.s32.totalorder %s55, %s69
      %p71 = scmp.eq.s32.totalorder %s24, 0
      %p72 = por %p70, %p71
      %s74 = sadd.s32 %s73, 1
      %p77 = scmp.eq.s32.totalorder %s18, 1
      %p78 = scmp.ne.s32.totalorder %s73, %s75
      %p79 = scmp.eq.s32.totalorder %s18, 0
      %p80 = por %p78, %p79
      %p81 = scmp.ne.s32.totalorder %s73, %s75
      %p82 = scmp.eq.s32.totalorder %s23, 1
      %p83 = por %p81, %p82
      %p84 = scmp.ne.s32.totalorder %s75, %s76
      %p85 = scmp.eq.s32.totalorder %s23, 0
      %p86 = por %p84, %p85
      %p87 = scmp.ne.s32.totalorder %s75, %s76
      %p88 = scmp.eq.s32.totalorder %s24, 1
      %p89 = por %p87, %p88
      %p91 = scmp.ne.s32.totalorder %s76, %s90
      %p92 = scmp.eq.s32.totalorder %s24, 0
      %p93 = por %p91, %p92
      %s95 = sadd.s32 %s94, 1
      %p98 = scmp.eq.s32.totalorder %s18, 1
      %p99 = scmp.ne.s32.totalorder %s94, %s96
      %p100 = scmp.eq.s32.totalorder %s18, 0
      %p101 = por %p99, %p100
      %p102 = scmp.ne.s32.totalorder %s94, %s96
      %p103 = scmp.eq.s32.totalorder %s23, 1
      %p104 = por %p102, %p103
      %p105 = scmp.ne.s32.totalorder %s96, %s97
      %p106 = scmp.eq.s32.totalorder %s23, 0
      %p107 = por %p105, %p106
      %p108 = scmp.ne.s32.totalorder %s96, %s97
      %p109 = scmp.eq.s32.totalorder %s24, 1
      %p110 = por %p108, %p109
      %p112 = scmp.ne.s32.totalorder %s97, %s111
      %p113 = scmp.eq.s32.totalorder %s24, 0
      %p114 = por %p112, %p113
      %s116 = sadd.s32 %s115, 1
      %p119 = scmp.eq.s32.totalorder %s18, 1
      %p120 = scmp.ne.s32.totalorder %s115, %s117
      %p121 = scmp.eq.s32.totalorder %s18, 0
      %p122 = por %p120, %p121
      %p123 = scmp.ne.s32.totalorder %s115, %s117
      %p124 = scmp.eq.s32.totalorder %s23, 1
      %p125 = por %p123, %p124
      %p126 = scmp.ne.s32.totalorder %s117, %s118
      %p127 = scmp.eq.s32.totalorder %s23, 0
      %p128 = por %p126, %p127
      %p129 = scmp.ne.s32.totalorder %s117, %s118
      %p130 = scmp.eq.s32.totalorder %s24, 1
      %p131 = por %p129, %p130
      %p133 = scmp.ne.s32.totalorder %s118, %s132
      %p134 = scmp.eq.s32.totalorder %s24, 0
      %p135 = por %p133, %p134
      %s137 = sadd.s32 %s136, 1
      %p140 = scmp.eq.s32.totalorder %s18, 1
      %p141 = scmp.ne.s32.totalorder %s136, %s138
      %p142 = scmp.eq.s32.totalorder %s18, 0
      %p143 = por %p141, %p142
      %p144 = scmp.ne.s32.totalorder %s136, %s138
      %p145 = scmp.eq.s32.totalorder %s23, 1
      %p146 = por %p144, %p145
      %p147 = scmp.ne.s32.totalorder %s138, %s139
      %p148 = scmp.eq.s32.totalorder %s23, 0
      %p149 = por %p147, %p148
      %p150 = scmp.ne.s32.totalorder %s138, %s139
      %p151 = scmp.eq.s32.totalorder %s24, 1
      %p152 = por %p150, %p151
      %p154 = scmp.ne.s32.totalorder %s139, %s153
      %p155 = scmp.eq.s32.totalorder %s24, 0
      %p156 = por %p154, %p155
      %s158 = sadd.s32 %s157, 1
      %p161 = scmp.eq.s32.totalorder %s18, 1
      %p162 = scmp.ne.s32.totalorder %s157, %s159
      %p163 = scmp.eq.s32.totalorder %s18, 0
      %p164 = por %p162, %p163
      %p165 = scmp.ne.s32.totalorder %s157, %s159
      %p166 = scmp.eq.s32.totalorder %s23, 1
      %p167 = por %p165, %p166
      %p168 = scmp.ne.s32.totalorder %s159, %s160
      %p169 = scmp.eq.s32.totalorder %s23, 0
      %p170 = por %p168, %p169
      %p171 = scmp.ne.s32.totalorder %s159, %s160
      %p172 = scmp.eq.s32.totalorder %s24, 1
      %p173 = por %p171, %p172
      %p175 = scmp.ne.s32.totalorder %s160, %s174
      %p176 = scmp.eq.s32.totalorder %s24, 0
      %p177 = por %p175, %p176
      %s179 = sadd.s32 %s178, 1
      %p182 = scmp.eq.s32.totalorder %s18, 1
      %p183 = scmp.ne.s32.totalorder %s178, %s180
      %p184 = scmp.eq.s32.totalorder %s18, 0
      %p185 = por %p183, %p184
      %p186 = scmp.ne.s32.totalorder %s178, %s180
      %p187 = scmp.eq.s32.totalorder %s23, 1
      %p188 = por %p186, %p187
      %p189 = scmp.ne.s32.totalorder %s180, %s181
      %p190 = scmp.eq.s32.totalorder %s23, 0
      %p191 = por %p189, %p190
      %p192 = scmp.ne.s32.totalorder %s180, %s181
      %p193 = scmp.eq.s32.totalorder %s24, 1
      %p194 = por %p192, %p193
      %p196 = scmp.ne.s32.totalorder %s181, %s195
      %p197 = scmp.eq.s32.totalorder %s24, 0
      %p198 = por %p196, %p197
      %s200 = sadd.s32 %s199, 1
      %p203 = scmp.eq.s32.totalorder %s18, 1
      %p204 = scmp.ne.s32.totalorder %s199, %s201
      %p205 = scmp.eq.s32.totalorder %s18, 0
      %p206 = por %p204, %p205
      %p207 = scmp.ne.s32.totalorder %s199, %s201
      %p208 = scmp.eq.s32.totalorder %s23, 1
      %p209 = por %p207, %p208
      %p210 = scmp.ne.s32.totalorder %s201, %s202
      %p211 = scmp.eq.s32.totalorder %s23, 0
      %p212 = por %p210, %p211
      %p213 = scmp.ne.s32.totalorder %s201, %s202
      %p214 = scmp.eq.s32.totalorder %s24, 1
      %p215 = por %p213, %p214
      %p217 = scmp.ne.s32.totalorder %s202, %s216
      %p218 = scmp.eq.s32.totalorder %s24, 0
      %p219 = por %p217, %p218
      %s220 = ssub.s32 %s18, %s25
      %p221 = scmp.eq.s32.totalorder %s220, 0
      %s223 = sadd.s32 %s222, 1
      %s224 = scalar_select %p221, %s222, %s223
      %p227 = pneg %p221
      %p228 = scmp.eq.s32.totalorder %s18, 1
      %p229 = por %p227, %p228
      %p230 = scmp.ne.s32.totalorder %s222, %s225
      %p231 = scmp.eq.s32.totalorder %s18, 0
      %p232 = por %p230, %p231
      %p233 = scmp.ne.s32.totalorder %s222, %s225
      %p234 = scmp.eq.s32.totalorder %s23, 1
      %p235 = por %p233, %p234
      %p236 = scmp.ne.s32.totalorder %s225, %s226
      %p237 = scmp.eq.s32.totalorder %s23, 0
      %p238 = por %p236, %p237
      %p239 = scmp.ne.s32.totalorder %s225, %s226
      %p240 = scmp.eq.s32.totalorder %s24, 1
      %p241 = por %p239, %p240
      %p243 = scmp.ne.s32.totalorder %s226, %s242
      %p244 = scmp.eq.s32.totalorder %s24, 0
      %p245 = por %p243, %p244
      %p246 = scmp.le.s32.totalorder 1, %s18
      %p247 = scmp.lt.s32.totalorder %s18, 3
      %p248 = pnand %p246, %p247
      %p249 = pneg %p248
      // Predicated region
      $region9: #{tpu_custom_call.1} parent=5 // pred_check
        _
      $region10: #{tpu_custom_call.1} parent=5 // pred_check_branch
        %251 = sbr.rel (%p248) target = $region12
      $region11: #{tpu_custom_call.1} parent=5 // pred_region
        %s252 = ssub.s32 %s18, 1
        // Predicated region
        $region13: #{tpu_custom_call.1} parent=11 // pred_check
          %p253 = pneg %p65
        $region14: #{tpu_custom_call.1} parent=11 // pred_check_branch
          %255 = sbr.rel (%p253) target = $region16
        $region15: #{tpu_custom_call.1} parent=11 // pred_region
          _
        $region16: #{tpu_custom_call.1} parent=11 // pred_fallthru
          _
        // Predicated region
        $region17: #{tpu_custom_call.1} parent=11 // pred_check
          %p256 = pneg %p86
        $region18: #{tpu_custom_call.1} parent=11 // pred_check_branch
          %258 = sbr.rel (%p256) target = $region20
        $region19: #{tpu_custom_call.1} parent=11 // pred_region
          _
        $region20: #{tpu_custom_call.1} parent=11 // pred_fallthru
          _
        // Predicated region
        $region21: #{tpu_custom_call.1} parent=11 // pred_check
          %p259 = pneg %p107
        $region22: #{tpu_custom_call.1} parent=11 // pred_check_branch
          %261 = sbr.rel (%p259) target = $region24
        $region23: #{tpu_custom_call.1} parent=11 // pred_region
          _
        $region24: #{tpu_custom_call.1} parent=11 // pred_fallthru
          _
        // Predicated region
        $region25: #{tpu_custom_call.1} parent=11 // pred_check
          %p262 = pneg %p128
        $region26: #{tpu_custom_call.1} parent=11 // pred_check_branch
          %264 = sbr.rel (%p262) target = $region28
        $region27: #{tpu_custom_call.1} parent=11 // pred_region
          _
        $region28: #{tpu_custom_call.1} parent=11 // pred_fallthru
          _
        // Predicated region
        $region29: #{tpu_custom_call.1} parent=11 // pred_check
          %p265 = pneg %p149
        $region30: #{tpu_custom_call.1} parent=11 // pred_check_branch
          %267 = sbr.rel (%p265) target = $region32
        $region31: #{tpu_custom_call.1} parent=11 // pred_region
          _
        $region32: #{tpu_custom_call.1} parent=11 // pred_fallthru
          _
        // Predicated region
        $region33: #{tpu_custom_call.1} parent=11 // pred_check
          %p268 = pneg %p170
        $region34: #{tpu_custom_call.1} parent=11 // pred_check_branch
          %270 = sbr.rel (%p268) target = $region36
        $region35: #{tpu_custom_call.1} parent=11 // pred_region
          _
        $region36: #{tpu_custom_call.1} parent=11 // pred_fallthru
          _
        // Predicated region
        $region37: #{tpu_custom_call.1} parent=11 // pred_check
          %p271 = pneg %p191
        $region38: #{tpu_custom_call.1} parent=11 // pred_check_branch
          %273 = sbr.rel (%p271) target = $region40
        $region39: #{tpu_custom_call.1} parent=11 // pred_region
          _
        $region40: #{tpu_custom_call.1} parent=11 // pred_fallthru
          _
        // Predicated region
        $region41: #{tpu_custom_call.1} parent=11 // pred_check
          %p274 = pneg %p212
        $region42: #{tpu_custom_call.1} parent=11 // pred_check_branch
          %276 = sbr.rel (%p274) target = $region44
        $region43: #{tpu_custom_call.1} parent=11 // pred_region
          _
        $region44: #{tpu_custom_call.1} parent=11 // pred_fallthru
          _
      $region12: #{tpu_custom_call.1} parent=5 // pred_fallthru
        _
      %p277 = scmp.lt.s32.totalorder %s18, 2
      // Predicated region
      $region45: #{tpu_custom_call.1} parent=5 // pred_check
        %p278 = pneg %p277
      $region46: #{tpu_custom_call.1} parent=5 // pred_check_branch
        %280 = sbr.rel (%p278) target = $region48
      $region47: #{tpu_custom_call.1} parent=5 // pred_region
        // Predicated region
        $region49: #{tpu_custom_call.1} parent=47 // pred_check
          %p281 = pneg %p38
        $region50: #{tpu_custom_call.1} parent=47 // pred_check_branch
          %283 = sbr.rel (%p281) target = $region52
        $region51: #{tpu_custom_call.1} parent=47 // pred_region
          %p284 = scmp.lt.s32.totalorder %s18, 1
          %s285 = scalar_select %p284, %s18, 1
          %s286 = smul.addr %s285, 8
          %s287 = scalar_lea.vmem %s0, %s286
        $region52: #{tpu_custom_call.1} parent=47 // pred_fallthru
          _
      $region48: #{tpu_custom_call.1} parent=5 // pred_fallthru
        _
      %p288 = scmp.le.s32.totalorder 1, %s18
      %p289 = scmp.lt.s32.totalorder %s18, 3
      %p290 = pnand %p288, %p289
      %p291 = pneg %p290
      // Predicated region
      $region53: #{tpu_custom_call.1} parent=5 // pred_check
        _
      $region54: #{tpu_custom_call.1} parent=5 // pred_check_branch
        %293 = sbr.rel (%p290) target = $region56
      $region55: #{tpu_custom_call.1} parent=5 // pred_region
        %s294 = ssub.s32 %s18, 1
        %p295 = scmp.lt.s32.totalorder %s23, 1
        %s296 = scalar_select %p295, %s23, 1
        %s297 = smul.addr %s296, 8
        %s298 = scalar_lea.vmem %s0, %s297
        %p299 = pneg %p44
        %p300 = pneg %p41
        %p301 = pneg %p65
        %p302 = pneg %p62
        %p303 = pneg %p86
        %p304 = pneg %p83
        %p305 = pneg %p107
        %p306 = pneg %p104
        %p307 = pneg %p128
        %p308 = pneg %p125
        %p309 = pneg %p149
        %p310 = pneg %p146
        %p311 = pneg %p170
        %p312 = pneg %p167
        %p313 = pneg %p191
        %p314 = pneg %p188
        %p315 = pneg %p212
        %p316 = pneg %p209
        %p317 = pneg %p238
        %p318 = pneg %p235
        %s319 = sand.u32 %s225, 1
        %s320 = scalar_lea.sflag [#allocation3], %s319
        %s321 = sand.u32 %s225, 1
        %s322 = smul.addr %s321, 8
        %s323 = scalar_lea.vmem [#allocation2], %s322
        %p324 = scmp.lt.s32.totalorder %s23, 1
        %s325 = scalar_select %p324, %s23, 1
        %s326 = smul.addr %s325, 8
        %s327 = scalar_lea.vmem %s0, %s326
        %v328 = vld [vmem:[%s327] sm:$0xff]
        %v329 = vld [vmem:[%s1] sm:$0xff]
        %v330 = vld [vmem:[%s1 + $0x8] sm:$0xff]
        %s331 = scalar_lea.vmem %s1, 16
        %v332 = vld [vmem:[%s331] sm:$0xff]
        %v333 = vld [vmem:[%s331 + $0x8] sm:$0xff]
        %335 = vrot.lane.b32.xlu0 %v328, 127
        %v336 = vpop.permute.xlu0 %335
        %vm338 = vcmask 64512
        %v340 = vsel %vm338, %v332, 0
        %v343 = vsel %vm338, %v333, 0
        %345 = vmatprep.subr.mxu0 0.0
        %346 = vmatpush1.msra.mxu0 %v336
        %347 = vmatprep.subr.mxu0 0.0
        %348 = vmatpush1.msra.mxu0 0.0
        %349 = vmatprep.subr.mxu0 0.0
        %350 = vmatpush1.msra.mxu0 0.0
        %351 = vmatprep.subr.mxu0 0.0
        %352 = vmatpush1.msra.mxu0 0.0
        %353 = vmatprep.subr.mxu0 0.0
        %354 = vmatpush1.msra.mxu0 0.0
        %355 = vmatprep.subr.mxu0 0.0
        %356 = vmatpush1.msra.mxu0 0.0
        %357 = vmatprep.subr.mxu0 0.0
        %358 = vmatpush1.msra.mxu0 0.0
        %359 = vmatprep.subr.mxu0 0.0
        %360 = vmatpush1.msra.mxu0 0.0
        %361 = vmatprep.subr.mxu0 0.0
        %362 = vmatpush1.msra.mxu0 0.0
        %363 = vmatprep.subr.mxu0 0.0
        %364 = vmatpush1.msra.mxu0 0.0
        %365 = vmatprep.subr.mxu0 0.0
        %366 = vmatpush1.msra.mxu0 0.0
        %367 = vmatprep.subr.mxu0 0.0
        %368 = vmatpush1.msra.mxu0 0.0
        %369 = vmatprep.subr.mxu0 0.0
        %370 = vmatpush1.msra.mxu0 0.0
        %371 = vmatprep.subr.mxu0 0.0
        %372 = vmatpush1.msra.mxu0 0.0
        %373 = vmatprep.subr.mxu0 0.0
        %374 = vmatpush1.msra.mxu0 0.0
        %375 = vmatprep.subr.mxu0 0.0
        %376 = vmatpush1.msra.mxu0 0.0
        %377 = vmatprep.subr.mxu0 0.0
        %378 = vmatpush1.msra.mxu0 0.0
        %379 = vmatprep.subr.mxu0 0.0
        %380 = vmatpush1.msra.mxu0 0.0
        %381 = vmatprep.subr.mxu0 0.0
        %382 = vmatpush1.msra.mxu0 0.0
        %383 = vmatprep.subr.mxu0 0.0
        %384 = vmatpush1.msra.mxu0 0.0
        %385 = vmatprep.subr.mxu0 0.0
        %386 = vmatpush1.msra.mxu0 0.0
        %387 = vmatprep.subr.mxu0 0.0
        %388 = vmatpush1.msra.mxu0 0.0
        %389 = vmatprep.subr.mxu0 0.0
        %390 = vmatpush1.msra.mxu0 0.0
        %391 = vmatprep.subr.mxu0 0.0
        %392 = vmatpush1.msra.mxu0 0.0
        %393 = vmatprep.subr.mxu0 0.0
        %394 = vmatpush1.msra.mxu0 0.0
        %395 = vmatprep.subr.mxu0 0.0
        %396 = vmatpush1.msra.mxu0 0.0
        %397 = vmatprep.subr.mxu0 0.0
        %398 = vmatpush1.msra.mxu0 0.0
        %399 = vmatprep.subr.mxu0 0.0
        %400 = vmatpush1.msra.mxu0 0.0
        %401 = vmatprep.subr.mxu0 0.0
        %402 = vmatpush1.msra.mxu0 0.0
        %403 = vmatprep.subr.mxu0 0.0
        %404 = vmatpush1.msra.mxu0 0.0
        %405 = vmatprep.subr.mxu0 0.0
        %406 = vmatpush1.msra.mxu0 0.0
        %407 = vmatprep.subr.mxu0 0.0
        %408 = vmatpush1.msra.mxu0 0.0
        %409 = vmatprep.mubr.f32.mxu0 0.0
        %410 = vmatmul.mubr.f32.gmra.mrb[0].mxu0 %v340
        %v411 = vpop.f32.mrb[0].mxu0
        %v412 = vadd.f32 0.0, %v411
        %v413 = vpop.f32.mrb[0].mxu0
        %414 = vmatprep.mubr.f32.mxu0 0.0
        %415 = vmatmul.mubr.f32.gmra.mrb[0].mxu0 %v343
        %v416 = vpop.f32.mrb[0].mxu0
        %v417 = vadd.f32 0.0, %v416
        %v418 = vpop.f32.mrb[0].mxu0
        %419 = vdwg.mxu0
        %v421 = vsel %vm338, %v329, 0
        %v424 = vsel %vm338, %v330, 0
        %426 = vmatprep.subr.mxu0 0.0
        %427 = vmatpush1.msra.mxu0 %v328
        %428 = vmatprep.subr.mxu0 0.0
        %429 = vmatpush1.msra.mxu0 0.0
        %430 = vmatprep.subr.mxu0 0.0
        %431 = vmatpush1.msra.mxu0 0.0
        %432 = vmatprep.subr.mxu0 0.0
        %433 = vmatpush1.msra.mxu0 0.0
        %434 = vmatprep.subr.mxu0 0.0
        %435 = vmatpush1.msra.mxu0 0.0
        %436 = vmatprep.subr.mxu0 0.0
        %437 = vmatpush1.msra.mxu0 0.0
        %438 = vmatprep.subr.mxu0 0.0
        %439 = vmatpush1.msra.mxu0 0.0
        %440 = vmatprep.subr.mxu0 0.0
        %441 = vmatpush1.msra.mxu0 0.0
        %442 = vmatprep.subr.mxu0 0.0
        %443 = vmatpush1.msra.mxu0 0.0
        %444 = vmatprep.subr.mxu0 0.0
        %445 = vmatpush1.msra.mxu0 0.0
        %446 = vmatprep.subr.mxu0 0.0
        %447 = vmatpush1.msra.mxu0 0.0
        %448 = vmatprep.subr.mxu0 0.0
        %449 = vmatpush1.msra.mxu0 0.0
        %450 = vmatprep.subr.mxu0 0.0
        %451 = vmatpush1.msra.mxu0 0.0
        %452 = vmatprep.subr.mxu0 0.0
        %453 = vmatpush1.msra.mxu0 0.0
        %454 = vmatprep.subr.mxu0 0.0
        %455 = vmatpush1.msra.mxu0 0.0
        %456 = vmatprep.subr.mxu0 0.0
        %457 = vmatpush1.msra.mxu0 0.0
        %458 = vmatprep.subr.mxu0 0.0
        %459 = vmatpush1.msra.mxu0 0.0
        %460 = vmatprep.subr.mxu0 0.0
        %461 = vmatpush1.msra.mxu0 0.0
        %462 = vmatprep.subr.mxu0 0.0
        %463 = vmatpush1.msra.mxu0 0.0
        %464 = vmatprep.subr.mxu0 0.0
        %465 = vmatpush1.msra.mxu0 0.0
        %466 = vmatprep.subr.mxu0 0.0
        %467 = vmatpush1.msra.mxu0 0.0
        %468 = vmatprep.subr.mxu0 0.0
        %469 = vmatpush1.msra.mxu0 0.0
        %470 = vmatprep.subr.mxu0 0.0
        %471 = vmatpush1.msra.mxu0 0.0
        %472 = vmatprep.subr.mxu0 0.0
        %473 = vmatpush1.msra.mxu0 0.0
        %474 = vmatprep.subr.mxu0 0.0
        %475 = vmatpush1.msra.mxu0 0.0
        %476 = vmatprep.subr.mxu0 0.0
        %477 = vmatpush1.msra.mxu0 0.0
        %478 = vmatprep.subr.mxu0 0.0
        %479 = vmatpush1.msra.mxu0 0.0
        %480 = vmatprep.subr.mxu0 0.0
        %481 = vmatpush1.msra.mxu0 0.0
        %482 = vmatprep.subr.mxu0 0.0
        %483 = vmatpush1.msra.mxu0 0.0
        %484 = vmatprep.subr.mxu0 0.0
        %485 = vmatpush1.msra.mxu0 0.0
        %486 = vmatprep.subr.mxu0 0.0
        %487 = vmatpush1.msra.mxu0 0.0
        %488 = vmatprep.subr.mxu0 0.0
        %489 = vmatpush1.msra.mxu0 0.0
        %490 = vmatprep.mubr.f32.mxu0 0.0
        %491 = vmatmul.mubr.f32.gmra.mrb[0].mxu0 %v421
        %v492 = vpop.f32.mrb[0].mxu0
        %v493 = vadd.f32 %v412, %v492
        %v494 = vpop.f32.mrb[0].mxu0
        %495 = vmatprep.mubr.f32.mxu0 0.0
        %496 = vmatmul.mubr.f32.gmra.mrb[0].mxu0 %v424
        %v497 = vpop.f32.mrb[0].mxu0
        %v498 = vadd.f32 %v417, %v497
        %v499 = vpop.f32.mrb[0].mxu0
        %500 = vdwg.mxu0
        %v501 = vld [vmem:[%s2] sm:$0xff]
        %v502 = vld [vmem:[%s2 + $0x8] sm:$0xff]
        %504 = vset.pattern.permute.xlu0 0
        %505 = vperm.xlu0 %504, %v501
        %v506 = vpop.permute.xlu0 %505
        %509 = vset.pattern.permute.xlu0 0
        %510 = vperm.xlu0 %509, %v502
        %v511 = vpop.permute.xlu0 %510
        %v513 = vadd.f32 %v493, %v506
        %v514 = vadd.f32 %v498, %v511
        %v515 = vmax.f32 %v513, 0.0
        %v516 = vld [vmem:[%s3] sm:$0xff]
        %s517 = scalar_lea.vmem %s3, 8
        %v518 = vld [vmem:[%s517] sm:$0xff]
        %520 = vrot.lane.b32.xlu0 %v515, 127
        %v521 = vpop.permute.xlu0 %520
        %v524 = vsel %vm338, %v518, 0
        %526 = vmatprep.subr.mxu0 0.0
        %527 = vmatpush1.msra.mxu0 %v521
        %528 = vmatprep.subr.mxu0 0.0
        %529 = vmatpush1.msra.mxu0 0.0
        %530 = vmatprep.subr.mxu0 0.0
        %531 = vmatpush1.msra.mxu0 0.0
        %532 = vmatprep.subr.mxu0 0.0
        %533 = vmatpush1.msra.mxu0 0.0
        %534 = vmatprep.subr.mxu0 0.0
        %535 = vmatpush1.msra.mxu0 0.0
        %536 = vmatprep.subr.mxu0 0.0
        %537 = vmatpush1.msra.mxu0 0.0
        %538 = vmatprep.subr.mxu0 0.0
        %539 = vmatpush1.msra.mxu0 0.0
        %540 = vmatprep.subr.mxu0 0.0
        %541 = vmatpush1.msra.mxu0 0.0
        %542 = vmatprep.subr.mxu0 0.0
        %543 = vmatpush1.msra.mxu0 0.0
        %544 = vmatprep.subr.mxu0 0.0
        %545 = vmatpush1.msra.mxu0 0.0
        %546 = vmatprep.subr.mxu0 0.0
        %547 = vmatpush1.msra.mxu0 0.0
        %548 = vmatprep.subr.mxu0 0.0
        %549 = vmatpush1.msra.mxu0 0.0
        %550 = vmatprep.subr.mxu0 0.0
        %551 = vmatpush1.msra.mxu0 0.0
        %552 = vmatprep.subr.mxu0 0.0
        %553 = vmatpush1.msra.mxu0 0.0
        %554 = vmatprep.subr.mxu0 0.0
        %555 = vmatpush1.msra.mxu0 0.0
        %556 = vmatprep.subr.mxu0 0.0
        %557 = vmatpush1.msra.mxu0 0.0
        %558 = vmatprep.subr.mxu0 0.0
        %559 = vmatpush1.msra.mxu0 0.0
        %560 = vmatprep.subr.mxu0 0.0
        %561 = vmatpush1.msra.mxu0 0.0
        %562 = vmatprep.subr.mxu0 0.0
        %563 = vmatpush1.msra.mxu0 0.0
        %564 = vmatprep.subr.mxu0 0.0
        %565 = vmatpush1.msra.mxu0 0.0
        %566 = vmatprep.subr.mxu0 0.0
        %567 = vmatpush1.msra.mxu0 0.0
        %568 = vmatprep.subr.mxu0 0.0
        %569 = vmatpush1.msra.mxu0 0.0
        %570 = vmatprep.subr.mxu0 0.0
        %571 = vmatpush1.msra.mxu0 0.0
        %572 = vmatprep.subr.mxu0 0.0
        %573 = vmatpush1.msra.mxu0 0.0
        %574 = vmatprep.subr.mxu0 0.0
        %575 = vmatpush1.msra.mxu0 0.0
        %576 = vmatprep.subr.mxu0 0.0
        %577 = vmatpush1.msra.mxu0 0.0
        %578 = vmatprep.subr.mxu0 0.0
        %579 = vmatpush1.msra.mxu0 0.0
        %580 = vmatprep.subr.mxu0 0.0
        %581 = vmatpush1.msra.mxu0 0.0
        %582 = vmatprep.subr.mxu0 0.0
        %583 = vmatpush1.msra.mxu0 0.0
        %584 = vmatprep.subr.mxu0 0.0
        %585 = vmatpush1.msra.mxu0 0.0
        %586 = vmatprep.subr.mxu0 0.0
        %587 = vmatpush1.msra.mxu0 0.0
        %588 = vmatprep.subr.mxu0 0.0
        %589 = vmatpush1.msra.mxu0 0.0
        %590 = vmatprep.mubr.f32.mxu0 0.0
        %591 = vmatmul.mubr.f32.gmra.mrb[0].mxu0 %v524
        %v592 = vpop.f32.mrb[0].mxu0
        %v593 = vadd.f32 0.0, %v592
        %v594 = vpop.f32.mrb[0].mxu0
        %595 = vdwg.mxu0
        %v597 = vsel %vm338, %v516, 0
        %599 = vmatprep.subr.mxu0 0.0
        %600 = vmatpush1.msra.mxu0 %v515
        %601 = vmatprep.subr.mxu0 0.0
        %602 = vmatpush1.msra.mxu0 0.0
        %603 = vmatprep.subr.mxu0 0.0
        %604 = vmatpush1.msra.mxu0 0.0
        %605 = vmatprep.subr.mxu0 0.0
        %606 = vmatpush1.msra.mxu0 0.0
        %607 = vmatprep.subr.mxu0 0.0
        %608 = vmatpush1.msra.mxu0 0.0
        %609 = vmatprep.subr.mxu0 0.0
        %610 = vmatpush1.msra.mxu0 0.0
        %611 = vmatprep.subr.mxu0 0.0
        %612 = vmatpush1.msra.mxu0 0.0
        %613 = vmatprep.subr.mxu0 0.0
        %614 = vmatpush1.msra.mxu0 0.0
        %615 = vmatprep.subr.mxu0 0.0
        %616 = vmatpush1.msra.mxu0 0.0
        %617 = vmatprep.subr.mxu0 0.0
        %618 = vmatpush1.msra.mxu0 0.0
        %619 = vmatprep.subr.mxu0 0.0
        %620 = vmatpush1.msra.mxu0 0.0
        %621 = vmatprep.subr.mxu0 0.0
        %622 = vmatpush1.msra.mxu0 0.0
        %623 = vmatprep.subr.mxu0 0.0
        %624 = vmatpush1.msra.mxu0 0.0
        %625 = vmatprep.subr.mxu0 0.0
        %626 = vmatpush1.msra.mxu0 0.0
        %627 = vmatprep.subr.mxu0 0.0
        %628 = vmatpush1.msra.mxu0 0.0
        %629 = vmatprep.subr.mxu0 0.0
        %630 = vmatpush1.msra.mxu0 0.0
        %631 = vmatprep.subr.mxu0 0.0
        %632 = vmatpush1.msra.mxu0 0.0
        %633 = vmatprep.subr.mxu0 0.0
        %634 = vmatpush1.msra.mxu0 0.0
        %635 = vmatprep.subr.mxu0 0.0
        %636 = vmatpush1.msra.mxu0 0.0
        %637 = vmatprep.subr.mxu0 0.0
        %638 = vmatpush1.msra.mxu0 0.0
        %639 = vmatprep.subr.mxu0 0.0
        %640 = vmatpush1.msra.mxu0 0.0
        %641 = vmatprep.subr.mxu0 0.0
        %642 = vmatpush1.msra.mxu0 0.0
        %643 = vmatprep.subr.mxu0 0.0
        %644 = vmatpush1.msra.mxu0 0.0
        %645 = vmatprep.subr.mxu0 0.0
        %646 = vmatpush1.msra.mxu0 0.0
        %647 = vmatprep.subr.mxu0 0.0
        %648 = vmatpush1.msra.mxu0 0.0
        %649 = vmatprep.subr.mxu0 0.0
        %650 = vmatpush1.msra.mxu0 0.0
        %651 = vmatprep.subr.mxu0 0.0
        %652 = vmatpush1.msra.mxu0 0.0
        %653 = vmatprep.subr.mxu0 0.0
        %654 = vmatpush1.msra.mxu0 0.0
        %655 = vmatprep.subr.mxu0 0.0
        %656 = vmatpush1.msra.mxu0 0.0
        %657 = vmatprep.subr.mxu0 0.0
        %658 = vmatpush1.msra.mxu0 0.0
        %659 = vmatprep.subr.mxu0 0.0
        %660 = vmatpush1.msra.mxu0 0.0
        %661 = vmatprep.subr.mxu0 0.0
        %662 = vmatpush1.msra.mxu0 0.0
        %663 = vmatprep.mubr.f32.mxu0 0.0
        %664 = vmatmul.mubr.f32.gmra.mrb[0].mxu0 %v597
        %v665 = vpop.f32.mrb[0].mxu0
        %v666 = vadd.f32 %v593, %v665
        %v667 = vpop.f32.mrb[0].mxu0
        %668 = vdwg.mxu0
        %v669 = vld [vmem:[%s4] sm:$0xff]
        %671 = vset.pattern.permute.xlu0 0
        %672 = vperm.xlu0 %671, %v669
        %v673 = vpop.permute.xlu0 %672
        %v675 = vadd.f32 %v666, %v673
        %v676 = vmax.f32 %v675, 0.0
        %v677 = vadd.f32 %v676, %v514
        %v678 = vmax.f32 %v677, 0.0
        %v679 = vld [vmem:[%s5] sm:$0xff]
        %s680 = scalar_lea.vmem %s5, 8
        %v681 = vld [vmem:[%s680] sm:$0xff]
        %683 = vrot.lane.b32.xlu0 %v678, 126
        %v684 = vpop.permute.xlu0 %683
        %v687 = vsel %vm338, %v681, 0
        %689 = vmatprep.subr.mxu0 0.0
        %690 = vmatpush1.msra.mxu0 %v684
        %691 = vmatprep.subr.mxu0 0.0
        %692 = vmatpush1.msra.mxu0 0.0
        %693 = vmatprep.subr.mxu0 0.0
        %694 = vmatpush1.msra.mxu0 0.0
        %695 = vmatprep.subr.mxu0 0.0
        %696 = vmatpush1.msra.mxu0 0.0
        %697 = vmatprep.subr.mxu0 0.0
        %698 = vmatpush1.msra.mxu0 0.0
        %699 = vmatprep.subr.mxu0 0.0
        %700 = vmatpush1.msra.mxu0 0.0
        %701 = vmatprep.subr.mxu0 0.0
        %702 = vmatpush1.msra.mxu0 0.0
        %703 = vmatprep.subr.mxu0 0.0
        %704 = vmatpush1.msra.mxu0 0.0
        %705 = vmatprep.subr.mxu0 0.0
        %706 = vmatpush1.msra.mxu0 0.0
        %707 = vmatprep.subr.mxu0 0.0
        %708 = vmatpush1.msra.mxu0 0.0
        %709 = vmatprep.subr.mxu0 0.0
        %710 = vmatpush1.msra.mxu0 0.0
        %711 = vmatprep.subr.mxu0 0.0
        %712 = vmatpush1.msra.mxu0 0.0
        %713 = vmatprep.subr.mxu0 0.0
        %714 = vmatpush1.msra.mxu0 0.0
        %715 = vmatprep.subr.mxu0 0.0
        %716 = vmatpush1.msra.mxu0 0.0
        %717 = vmatprep.subr.mxu0 0.0
        %718 = vmatpush1.msra.mxu0 0.0
        %719 = vmatprep.subr.mxu0 0.0
        %720 = vmatpush1.msra.mxu0 0.0
        %721 = vmatprep.subr.mxu0 0.0
        %722 = vmatpush1.msra.mxu0 0.0
        %723 = vmatprep.subr.mxu0 0.0
        %724 = vmatpush1.msra.mxu0 0.0
        %725 = vmatprep.subr.mxu0 0.0
        %726 = vmatpush1.msra.mxu0 0.0
        %727 = vmatprep.subr.mxu0 0.0
        %728 = vmatpush1.msra.mxu0 0.0
        %729 = vmatprep.subr.mxu0 0.0
        %730 = vmatpush1.msra.mxu0 0.0
        %731 = vmatprep.subr.mxu0 0.0
        %732 = vmatpush1.msra.mxu0 0.0
        %733 = vmatprep.subr.mxu0 0.0
        %734 = vmatpush1.msra.mxu0 0.0
        %735 = vmatprep.subr.mxu0 0.0
        %736 = vmatpush1.msra.mxu0 0.0
        %737 = vmatprep.subr.mxu0 0.0
        %738 = vmatpush1.msra.mxu0 0.0
        %739 = vmatprep.subr.mxu0 0.0
        %740 = vmatpush1.msra.mxu0 0.0
        %741 = vmatprep.subr.mxu0 0.0
        %742 = vmatpush1.msra.mxu0 0.0
        %743 = vmatprep.subr.mxu0 0.0
        %744 = vmatpush1.msra.mxu0 0.0
        %745 = vmatprep.subr.mxu0 0.0
        %746 = vmatpush1.msra.mxu0 0.0
        %747 = vmatprep.subr.mxu0 0.0
        %748 = vmatpush1.msra.mxu0 0.0
        %749 = vmatprep.subr.mxu0 0.0
        %750 = vmatpush1.msra.mxu0 0.0
        %751 = vmatprep.subr.mxu0 0.0
        %752 = vmatpush1.msra.mxu0 0.0
        %753 = vmatprep.mubr.f32.mxu0 0.0
        %754 = vmatmul.mubr.f32.gmra.mrb[0].mxu0 %v687
        %v755 = vpop.f32.mrb[0].mxu0
        %v756 = vadd.f32 0.0, %v755
        %v757 = vpop.f32.mrb[0].mxu0
        %758 = vdwg.mxu0
        %v760 = vsel %vm338, %v679, 0
        %762 = vmatprep.subr.mxu0 0.0
        %763 = vmatpush1.msra.mxu0 %v678
        %764 = vmatprep.subr.mxu0 0.0
        %765 = vmatpush1.msra.mxu0 0.0
        %766 = vmatprep.subr.mxu0 0.0
        %767 = vmatpush1.msra.mxu0 0.0
        %768 = vmatprep.subr.mxu0 0.0
        %769 = vmatpush1.msra.mxu0 0.0
        %770 = vmatprep.subr.mxu0 0.0
        %771 = vmatpush1.msra.mxu0 0.0
        %772 = vmatprep.subr.mxu0 0.0
        %773 = vmatpush1.msra.mxu0 0.0
        %774 = vmatprep.subr.mxu0 0.0
        %775 = vmatpush1.msra.mxu0 0.0
        %776 = vmatprep.subr.mxu0 0.0
        %777 = vmatpush1.msra.mxu0 0.0
        %778 = vmatprep.subr.mxu0 0.0
        %779 = vmatpush1.msra.mxu0 0.0
        %780 = vmatprep.subr.mxu0 0.0
        %781 = vmatpush1.msra.mxu0 0.0
        %782 = vmatprep.subr.mxu0 0.0
        %783 = vmatpush1.msra.mxu0 0.0
        %784 = vmatprep.subr.mxu0 0.0
        %785 = vmatpush1.msra.mxu0 0.0
        %786 = vmatprep.subr.mxu0 0.0
        %787 = vmatpush1.msra.mxu0 0.0
        %788 = vmatprep.subr.mxu0 0.0
        %789 = vmatpush1.msra.mxu0 0.0
        %790 = vmatprep.subr.mxu0 0.0
        %791 = vmatpush1.msra.mxu0 0.0
        %792 = vmatprep.subr.mxu0 0.0
        %793 = vmatpush1.msra.mxu0 0.0
        %794 = vmatprep.subr.mxu0 0.0
        %795 = vmatpush1.msra.mxu0 0.0
        %796 = vmatprep.subr.mxu0 0.0
        %797 = vmatpush1.msra.mxu0 0.0
        %798 = vmatprep.subr.mxu0 0.0
        %799 = vmatpush1.msra.mxu0 0.0
        %800 = vmatprep.subr.mxu0 0.0
        %801 = vmatpush1.msra.mxu0 0.0
        %802 = vmatprep.subr.mxu0 0.0
        %803 = vmatpush1.msra.mxu0 0.0
        %804 = vmatprep.subr.mxu0 0.0
        %805 = vmatpush1.msra.mxu0 0.0
        %806 = vmatprep.subr.mxu0 0.0
        %807 = vmatpush1.msra.mxu0 0.0
        %808 = vmatprep.subr.mxu0 0.0
        %809 = vmatpush1.msra.mxu0 0.0
        %810 = vmatprep.subr.mxu0 0.0
        %811 = vmatpush1.msra.mxu0 0.0
        %812 = vmatprep.subr.mxu0 0.0
        %813 = vmatpush1.msra.mxu0 0.0
        %814 = vmatprep.subr.mxu0 0.0
        %815 = vmatpush1.msra.mxu0 0.0
        %816 = vmatprep.subr.mxu0 0.0
        %817 = vmatpush1.msra.mxu0 0.0
        %818 = vmatprep.subr.mxu0 0.0
        %819 = vmatpush1.msra.mxu0 0.0
        %820 = vmatprep.subr.mxu0 0.0
        %821 = vmatpush1.msra.mxu0 0.0
        %822 = vmatprep.subr.mxu0 0.0
        %823 = vmatpush1.msra.mxu0 0.0
        %824 = vmatprep.subr.mxu0 0.0
        %825 = vmatpush1.msra.mxu0 0.0
        %826 = vmatprep.mubr.f32.mxu0 0.0
        %827 = vmatmul.mubr.f32.gmra.mrb[0].mxu0 %v760
        %v828 = vpop.f32.mrb[0].mxu0
        %v829 = vadd.f32 %v756, %v828
        %v830 = vpop.f32.mrb[0].mxu0
        %831 = vdwg.mxu0
        %v832 = vld [vmem:[%s6] sm:$0xff]
        %834 = vset.pattern.permute.xlu0 0
        %835 = vperm.xlu0 %834, %v832
        %v836 = vpop.permute.xlu0 %835
        %v838 = vadd.f32 %v829, %v836
        %v839 = vmax.f32 %v838, 0.0
        %v840 = vld [vmem:[%s7] sm:$0xff]
        %s841 = scalar_lea.vmem %s7, 8
        %v842 = vld [vmem:[%s841] sm:$0xff]
        %844 = vrot.lane.b32.xlu0 %v839, 126
        %v845 = vpop.permute.xlu0 %844
        %v848 = vsel %vm338, %v842, 0
        %850 = vmatprep.subr.mxu0 0.0
        %851 = vmatpush1.msra.mxu0 %v845
        %852 = vmatprep.subr.mxu0 0.0
        %853 = vmatpush1.msra.mxu0 0.0
        %854 = vmatprep.subr.mxu0 0.0
        %855 = vmatpush1.msra.mxu0 0.0
        %856 = vmatprep.subr.mxu0 0.0
        %857 = vmatpush1.msra.mxu0 0.0
        %858 = vmatprep.subr.mxu0 0.0
        %859 = vmatpush1.msra.mxu0 0.0
        %860 = vmatprep.subr.mxu0 0.0
        %861 = vmatpush1.msra.mxu0 0.0
        %862 = vmatprep.subr.mxu0 0.0
        %863 = vmatpush1.msra.mxu0 0.0
        %864 = vmatprep.subr.mxu0 0.0
        %865 = vmatpush1.msra.mxu0 0.0
        %866 = vmatprep.subr.mxu0 0.0
        %867 = vmatpush1.msra.mxu0 0.0
        %868 = vmatprep.subr.mxu0 0.0
        %869 = vmatpush1.msra.mxu0 0.0
        %870 = vmatprep.subr.mxu0 0.0
        %871 = vmatpush1.msra.mxu0 0.0
        %872 = vmatprep.subr.mxu0 0.0
        %873 = vmatpush1.msra.mxu0 0.0
        %874 = vmatprep.subr.mxu0 0.0
        %875 = vmatpush1.msra.mxu0 0.0
        %876 = vmatprep.subr.mxu0 0.0
        %877 = vmatpush1.msra.mxu0 0.0
        %878 = vmatprep.subr.mxu0 0.0
        %879 = vmatpush1.msra.mxu0 0.0
        %880 = vmatprep.subr.mxu0 0.0
        %881 = vmatpush1.msra.mxu0 0.0
        %882 = vmatprep.subr.mxu0 0.0
        %883 = vmatpush1.msra.mxu0 0.0
        %884 = vmatprep.subr.mxu0 0.0
        %885 = vmatpush1.msra.mxu0 0.0
        %886 = vmatprep.subr.mxu0 0.0
        %887 = vmatpush1.msra.mxu0 0.0
        %888 = vmatprep.subr.mxu0 0.0
        %889 = vmatpush1.msra.mxu0 0.0
        %890 = vmatprep.subr.mxu0 0.0
        %891 = vmatpush1.msra.mxu0 0.0
        %892 = vmatprep.subr.mxu0 0.0
        %893 = vmatpush1.msra.mxu0 0.0
        %894 = vmatprep.subr.mxu0 0.0
        %895 = vmatpush1.msra.mxu0 0.0
        %896 = vmatprep.subr.mxu0 0.0
        %897 = vmatpush1.msra.mxu0 0.0
        %898 = vmatprep.subr.mxu0 0.0
        %899 = vmatpush1.msra.mxu0 0.0
        %900 = vmatprep.subr.mxu0 0.0
        %901 = vmatpush1.msra.mxu0 0.0
        %902 = vmatprep.subr.mxu0 0.0
        %903 = vmatpush1.msra.mxu0 0.0
        %904 = vmatprep.subr.mxu0 0.0
        %905 = vmatpush1.msra.mxu0 0.0
        %906 = vmatprep.subr.mxu0 0.0
        %907 = vmatpush1.msra.mxu0 0.0
        %908 = vmatprep.subr.mxu0 0.0
        %909 = vmatpush1.msra.mxu0 0.0
        %910 = vmatprep.subr.mxu0 0.0
        %911 = vmatpush1.msra.mxu0 0.0
        %912 = vmatprep.subr.mxu0 0.0
        %913 = vmatpush1.msra.mxu0 0.0
        %914 = vmatprep.mubr.f32.mxu0 0.0
        %915 = vmatmul.mubr.f32.gmra.mrb[0].mxu0 %v848
        %v916 = vpop.f32.mrb[0].mxu0
        %v917 = vadd.f32 0.0, %v916
        %v918 = vpop.f32.mrb[0].mxu0
        %919 = vdwg.mxu0
        %v921 = vsel %vm338, %v840, 0
        %923 = vmatprep.subr.mxu0 0.0
        %924 = vmatpush1.msra.mxu0 %v839
        %925 = vmatprep.subr.mxu0 0.0
        %926 = vmatpush1.msra.mxu0 0.0
        %927 = vmatprep.subr.mxu0 0.0
        %928 = vmatpush1.msra.mxu0 0.0
        %929 = vmatprep.subr.mxu0 0.0
        %930 = vmatpush1.msra.mxu0 0.0
        %931 = vmatprep.subr.mxu0 0.0
        %932 = vmatpush1.msra.mxu0 0.0
        %933 = vmatprep.subr.mxu0 0.0
        %934 = vmatpush1.msra.mxu0 0.0
        %935 = vmatprep.subr.mxu0 0.0
        %936 = vmatpush1.msra.mxu0 0.0
        %937 = vmatprep.subr.mxu0 0.0
        %938 = vmatpush1.msra.mxu0 0.0
        %939 = vmatprep.subr.mxu0 0.0
        %940 = vmatpush1.msra.mxu0 0.0
        %941 = vmatprep.subr.mxu0 0.0
        %942 = vmatpush1.msra.mxu0 0.0
        %943 = vmatprep.subr.mxu0 0.0
        %944 = vmatpush1.msra.mxu0 0.0
        %945 = vmatprep.subr.mxu0 0.0
        %946 = vmatpush1.msra.mxu0 0.0
        %947 = vmatprep.subr.mxu0 0.0
        %948 = vmatpush1.msra.mxu0 0.0
        %949 = vmatprep.subr.mxu0 0.0
        %950 = vmatpush1.msra.mxu0 0.0
        %951 = vmatprep.subr.mxu0 0.0
        %952 = vmatpush1.msra.mxu0 0.0
        %953 = vmatprep.subr.mxu0 0.0
        %954 = vmatpush1.msra.mxu0 0.0
        %955 = vmatprep.subr.mxu0 0.0
        %956 = vmatpush1.msra.mxu0 0.0
        %957 = vmatprep.subr.mxu0 0.0
        %958 = vmatpush1.msra.mxu0 0.0
        %959 = vmatprep.subr.mxu0 0.0
        %960 = vmatpush1.msra.mxu0 0.0
        %961 = vmatprep.subr.mxu0 0.0
        %962 = vmatpush1.msra.mxu0 0.0
        %963 = vmatprep.subr.mxu0 0.0
        %964 = vmatpush1.msra.mxu0 0.0
        %965 = vmatprep.subr.mxu0 0.0
        %966 = vmatpush1.msra.mxu0 0.0
        %967 = vmatprep.subr.mxu0 0.0
        %968 = vmatpush1.msra.mxu0 0.0
        %969 = vmatprep.subr.mxu0 0.0
        %970 = vmatpush1.msra.mxu0 0.0
        %971 = vmatprep.subr.mxu0 0.0
        %972 = vmatpush1.msra.mxu0 0.0
        %973 = vmatprep.subr.mxu0 0.0
        %974 = vmatpush1.msra.mxu0 0.0
        %975 = vmatprep.subr.mxu0 0.0
        %976 = vmatpush1.msra.mxu0 0.0
        %977 = vmatprep.subr.mxu0 0.0
        %978 = vmatpush1.msra.mxu0 0.0
        %979 = vmatprep.subr.mxu0 0.0
        %980 = vmatpush1.msra.mxu0 0.0
        %981 = vmatprep.subr.mxu0 0.0
        %982 = vmatpush1.msra.mxu0 0.0
        %983 = vmatprep.subr.mxu0 0.0
        %984 = vmatpush1.msra.mxu0 0.0
        %985 = vmatprep.subr.mxu0 0.0
        %986 = vmatpush1.msra.mxu0 0.0
        %987 = vmatprep.mubr.f32.mxu0 0.0
        %988 = vmatmul.mubr.f32.gmra.mrb[0].mxu0 %v921
        %v989 = vpop.f32.mrb[0].mxu0
        %v990 = vadd.f32 %v917, %v989
        %v991 = vpop.f32.mrb[0].mxu0
        %992 = vdwg.mxu0
        %v993 = vld [vmem:[%s8] sm:$0xff]
        %995 = vset.pattern.permute.xlu0 0
        %996 = vperm.xlu0 %995, %v993
        %v997 = vpop.permute.xlu0 %996
        %v999 = vadd.f32 %v990, %v997
        %v1000 = vmax.f32 %v999, 0.0
        %v1001 = vadd.f32 %v1000, %v684
        %v1002 = vmax.f32 %v1001, 0.0
        %vm1003 = vcmask 80896
        %1004 = vst.msk [vmem:[%s323] sm:$0xff] %vm1003, %v1002
        %s1005 = sand.u32 %s225, 1
        %s1006 = scalar_lea.sflag [#allocation3], %s1005
        %s1007 = sand.u32 %s225, 1
        %s1008 = smul.addr %s1007, 8
        %s1009 = scalar_lea.vmem [#allocation2], %s1008
        // Predicated region
        $region57: #{tpu_custom_call.1} parent=55 // pred_check
          %p1010 = pneg %p235
        $region58: #{tpu_custom_call.1} parent=55 // pred_check_branch
          %1012 = sbr.rel (%p1010) target = $region60
        $region59: #{tpu_custom_call.1} parent=55 // pred_region
          %s1014 = ssub.s32 128, 128
          %1015 = vsyncadd %s1006, %s1014
          %s1016 = smul.addr %s23, 128
          %s1017 = scalar_lea.hbm %s9, %s1016
          %s1019 = sshll.u32 %s1009, 4
          %s1020 = int_to_ptr.vmem [resolvable:$true] %s1019
          %1022 = dma.vmem_to_hbm [thread:$0]  %s1020, 128, %s1017, %s1006
        $region60: #{tpu_custom_call.1} parent=55 // pred_fallthru
          _
      $region56: #{tpu_custom_call.1} parent=5 // pred_fallthru
        _
      %p1023 = scmp.le.s32.totalorder 2, %s18
      // Predicated region
      $region61: #{tpu_custom_call.1} parent=5 // pred_check
        %p1024 = pneg %p1023
      $region62: #{tpu_custom_call.1} parent=5 // pred_check_branch
        %1026 = sbr.rel (%p1024) target = $region64
      $region63: #{tpu_custom_call.1} parent=5 // pred_region
        %s1027 = ssub.s32 %s18, 2
        // Predicated region
        $region65: #{tpu_custom_call.1} parent=63 // pred_check
          %p1028 = pneg %p241
        $region66: #{tpu_custom_call.1} parent=63 // pred_check_branch
          %1030 = sbr.rel (%p1028) target = $region68
        $region67: #{tpu_custom_call.1} parent=63 // pred_region
          %s1031 = sand.u32 %s226, 1
          %s1032 = scalar_lea.sflag [#allocation3], %s1031
          %s1033 = sand.u32 %s226, 1
          %s1034 = smul.addr %s1033, 8
          %s1035 = scalar_lea.vmem [#allocation2], %s1034
          %1036 = dma.done %s1032, 128
        $region68: #{tpu_custom_call.1} parent=63 // pred_fallthru
          _
      $region64: #{tpu_custom_call.1} parent=5 // pred_fallthru
        _
    $region6: #{tpu_custom_call.1} parent=1 // loop_footer
      %s22 = sadd.s32 1, %s18
    $region7: #{tpu_custom_call.1} parent=1 // loop_footer_branch
      %17 = sbr.rel target = $region3
    $region8: #{tpu_custom_call.1} parent=1 // loop_exit
      _
    %1037 = vsyncpa [#allocation3], 1
    %s1038 = scalar_lea.sflag [#allocation3], 1
    %1039 = vsyncpa %s1038, 1

</llo_original>
